<compile_context>
chip_gen: v6e
topology: v6e:2x2x1
jax: 0.10.0
libtpu: 0.0.40
codegen_flags: <defaults>
</compile_context>

<pallas_src>
import functools
import math

import jax
import jax.numpy as jnp
from jax.experimental import pallas as pl
from jax.experimental.pallas import tpu as pltpu

_LANE = 128  # lane width / MXU-friendly padding granule


# ----------------------------------------------------------------------------
# Fused Pallas kernel: all GCN layers + masked log_softmax epilogue
# ----------------------------------------------------------------------------
def _fused_gcn_kernel(*refs, num_layers, nclass):
    """refs = (adj, x, W0, b0, W1, b1, ..., W_{L-1}, b_{L-1}, out).

    adj, x, W_i are bf16 (MXU operands); b_i and all elementwise math are f32.
    All shapes are padded to multiples of 128; padded class lanes are masked
    out of the log_softmax and written as 0 (sliced off by the wrapper).
    """
    adj_ref, x_ref = refs[0], refs[1]
    o_ref = refs[-1]
    wb_refs = refs[2:-1]

    adj = adj_ref[...]          # (Np, Np)  bf16
    h = x_ref[...]              # (Np, F0p) bf16

    out = None
    for i in range(num_layers):
        w = wb_refs[2 * i][...]          # (Fin_p, Fout_p) bf16
        b = wb_refs[2 * i + 1][...]      # (1, Fout_p)     f32
        # support = h @ W   (bf16 MXU, f32 accumulate)
        support = jnp.dot(h, w, preferred_element_type=jnp.float32)
        # out = adj @ support + b
        out = jnp.dot(adj, support.astype(jnp.bfloat16),
                      preferred_element_type=jnp.float32)
        out = out + b
        if i < num_layers - 1:
            out = jnp.maximum(out, 0.0)          # ReLU in f32
            h = out.astype(jnp.bfloat16)         # next layer's MXU operand
            # dropout: identity in eval mode

    # log_softmax along the class axis, masking the zero-padded lanes.
    col = jax.lax.broadcasted_iota(jnp.int32, out.shape, 1)
    valid = col < nclass
    masked = jnp.where(valid, out, jnp.float32(-1e30))
    m = jnp.max(masked, axis=1, keepdims=True)
    shifted = masked - m
    lse = jnp.log(jnp.sum(jnp.where(valid, jnp.exp(shifted), 0.0),
                          axis=1, keepdims=True))
    o_ref[...] = jnp.where(valid, shifted - lse, 0.0).astype(o_ref.dtype)


# ----------------------------------------------------------------------------
# Wrapper: pad to lane-dense shapes, cast MXU operands to bf16, single call
# ----------------------------------------------------------------------------
def _round_up(v, m):
    return (v + m - 1) // m * m


def multilayer_gcn_forward(params, x, adj):
    """Eval-mode forward pass of MultiLayerGCN as one fused pallas_call."""
    num_layers = len(params)
    n, f0 = x.shape
    nclass = params[-1][0].shape[1]

    n_pad = _round_up(n, _LANE)
    f0_pad = _round_up(f0, _LANE)
    nclass_pad = _round_up(nclass, _LANE)

    # Zero-padded, bf16 MXU operands (padding is exact: zero rows/cols of adj
    # and W contribute nothing to the real outputs).
    adj_p = jnp.zeros((n_pad, n_pad), jnp.bfloat16).at[:n, :n].set(
        adj.astype(jnp.bfloat16))
    x_p = jnp.zeros((n_pad, f0_pad), jnp.bfloat16).at[:n, :f0].set(
        x.astype(jnp.bfloat16))

    wb_inputs = []
    for (w, b) in params:
        fin, fout = w.shape
        fin_p, fout_p = _round_up(fin, _LANE), _round_up(fout, _LANE)
        w_p = jnp.zeros((fin_p, fout_p), jnp.bfloat16).at[:fin, :fout].set(
            w.astype(jnp.bfloat16))
        b_p = jnp.zeros((1, fout_p), jnp.float32).at[:, :fout].set(
            b.astype(jnp.float32))
        wb_inputs += [w_p, b_p]

    kernel = functools.partial(
        _fused_gcn_kernel, num_layers=num_layers, nclass=nclass)
    n_inputs = 2 + len(wb_inputs)

    out_p = pl.pallas_call(
        kernel,
        out_shape=jax.ShapeDtypeStruct((n_pad, nclass_pad), jnp.float32),
        in_specs=[pl.BlockSpec(memory_space=pltpu.VMEM)] * n_inputs,
        out_specs=pl.BlockSpec(memory_space=pltpu.VMEM),
        compiler_params=pltpu.CompilerParams(
            vmem_limit_bytes=64 * 1024 * 1024),
    )(adj_p, x_p, *wb_inputs)

    return out_p[:n, :nclass]


# ----------------------------------------------------------------------------
# Parameter init mirroring GraphConvolution.reset_parameters
# ----------------------------------------------------------------------------
def init_multilayer_gcn_params(key, nfeat, nhid, nclass, num_layers):
    """uniform(-stdv, stdv) with stdv = 1/sqrt(out_features)."""
    if num_layers <= 1:
        dims = [(nfeat, nclass)]
    else:
        dims = [(nfeat, nhid)]
        dims += [(nhid, nhid) for _ in range(1, num_layers - 1)]
        dims += [(nhid, nclass)]

    params = []
    for (fin, fout) in dims:
        key, kw, kb = jax.random.split(key, 3)
        stdv = 1.0 / math.sqrt(fout)
        w = jax.random.uniform(kw, (fin, fout), jnp.float32, -stdv, stdv)
        b = jax.random.uniform(kb, (1, fout), jnp.float32, -stdv, stdv)
        params.append((w, b))
    return params


# ----------------------------------------------------------------------------
# Main
# ----------------------------------------------------------------------------
if __name__ == "__main__":
    # MXU-friendly (>=128 nodes), non-multiple-of-128 feature dims to exercise
    # the lane-dense padding path.
    N_NODES = 128
    NFEAT = 96
    NHID = 64
    NCLASS = 10
    NUM_LAYERS = 3
    DROPOUT = 0.5  # unused in eval mode

    key = jax.random.PRNGKey(0)
    k_params, k_x, k_adj = jax.random.split(key, 3)

    params = init_multilayer_gcn_params(k_params, NFEAT, NHID, NCLASS, NUM_LAYERS)
    x = jax.random.normal(k_x, (N_NODES, NFEAT), jnp.float32)

    # Symmetric normalized adjacency with self-loops (typical GCN preprocessing).
    a = (jax.random.uniform(k_adj, (N_NODES, N_NODES)) < 0.1).astype(jnp.float32)
    a = jnp.maximum(a, a.T)
    a = a + jnp.eye(N_NODES, dtype=jnp.float32)
    deg = jnp.sum(a, axis=1)
    d_inv_sqrt = 1.0 / jnp.sqrt(deg)
    adj = a * d_inv_sqrt[:, None] * d_inv_sqrt[None, :]

    forward = jax.jit(multilayer_gcn_forward)
    out = jax.block_until_ready(forward(params, x, adj))

    # Pure-JAX reference mirroring the kernel's bf16-MXU / f32-accumulate math.
    def reference_forward(params, x, adj):
        adj_b = adj.astype(jnp.bfloat16)
        h = x.astype(jnp.bfloat16)
        n_layers = len(params)
        out_ref = None
        for i, (w, b) in enumerate(params):
            s = jnp.dot(h, w.astype(jnp.bfloat16),
                        preferred_element_type=jnp.float32)
            out_ref = jnp.dot(adj_b, s.astype(jnp.bfloat16),
                              preferred_element_type=jnp.float32) + b
            if i < n_layers - 1:
                out_ref = jnp.maximum(out_ref, 0.0)
                h = out_ref.astype(jnp.bfloat16)
        return jax.nn.log_softmax(out_ref, axis=1)

    ref = jax.block_until_ready(reference_forward(params, x, adj))

    assert out.shape == (N_NODES, NCLASS)
    # log_softmax rows must (log-)sum to ~0.
    row_lse = jax.scipy.special.logsumexp(out, axis=1)
    assert bool(jnp.all(jnp.abs(row_lse) < 1e-4))
    # Kernel matches the numerics-matched reference.
    assert bool(jnp.allclose(out, ref, atol=5e-3, rtol=5e-3))

    print("KERNEL_OK")
</pallas_src>

<mosaic_0001>
module attributes {stable_mosaic.version = 11 : i64} {
  func.func @_fused_gcn_kernel(%arg0: memref<128x128xbf16, #tpu.memory_space<vmem>>, %arg1: memref<128x128xbf16, #tpu.memory_space<vmem>>, %arg2: memref<128x128xbf16, #tpu.memory_space<vmem>>, %arg3: memref<1x128xf32, #tpu.memory_space<vmem>>, %arg4: memref<128x128xbf16, #tpu.memory_space<vmem>>, %arg5: memref<1x128xf32, #tpu.memory_space<vmem>>, %arg6: memref<128x128xbf16, #tpu.memory_space<vmem>>, %arg7: memref<1x128xf32, #tpu.memory_space<vmem>>, %arg8: memref<128x128xf32, #tpu.memory_space<vmem>>) attributes {dimension_semantics = [], scalar_prefetch = 0 : i64, scratch_operands = 0 : i64, tpu.core_type = #tpu.core_type<tc>} {
    %c0 = arith.constant 0 : index
    %c0_0 = arith.constant 0 : index
    %0 = vector.load %arg0[%c0, %c0_0] : memref<128x128xbf16, #tpu.memory_space<vmem>>, vector<128x128xbf16>
    %c0_1 = arith.constant 0 : index
    %c0_2 = arith.constant 0 : index
    %1 = vector.load %arg1[%c0_1, %c0_2] : memref<128x128xbf16, #tpu.memory_space<vmem>>, vector<128x128xbf16>
    %c0_3 = arith.constant 0 : index
    %c0_4 = arith.constant 0 : index
    %2 = vector.load %arg2[%c0_3, %c0_4] : memref<128x128xbf16, #tpu.memory_space<vmem>>, vector<128x128xbf16>
    %c0_5 = arith.constant 0 : index
    %c0_6 = arith.constant 0 : index
    %3 = vector.load %arg3[%c0_5, %c0_6] : memref<1x128xf32, #tpu.memory_space<vmem>>, vector<1x128xf32>
    %cst = arith.constant dense<0.000000e+00> : vector<128x128xf32>
    %4 = tpu.matmul %1, %2, %cst {dimension_numbers = #tpu.dot_dimension_numbers<[1], [0], [0], [1], [0, 0, 1, 1], [], []>} : vector<128x128xbf16>, vector<128x128xbf16>, vector<128x128xf32> -> vector<128x128xf32>
    %5 = arith.truncf %4 : vector<128x128xf32> to vector<128x128xbf16>
    %cst_7 = arith.constant dense<0.000000e+00> : vector<128x128xf32>
    %6 = tpu.matmul %0, %5, %cst_7 {dimension_numbers = #tpu.dot_dimension_numbers<[1], [0], [0], [1], [0, 0, 1, 1], [], []>} : vector<128x128xbf16>, vector<128x128xbf16>, vector<128x128xf32> -> vector<128x128xf32>
    %7 = vector.broadcast %3 : vector<1x128xf32> to vector<128x128xf32>
    %8 = arith.addf %6, %7 : vector<128x128xf32>
    %cst_8 = arith.constant 0.000000e+00 : f32
    %9 = vector.broadcast %cst_8 : f32 to vector<128x128xf32>
    %10 = arith.maximumf %8, %9 : vector<128x128xf32>
    %11 = arith.truncf %10 : vector<128x128xf32> to vector<128x128xbf16>
    %c0_9 = arith.constant 0 : index
    %c0_10 = arith.constant 0 : index
    %12 = vector.load %arg4[%c0_9, %c0_10] : memref<128x128xbf16, #tpu.memory_space<vmem>>, vector<128x128xbf16>
    %c0_11 = arith.constant 0 : index
    %c0_12 = arith.constant 0 : index
    %13 = vector.load %arg5[%c0_11, %c0_12] : memref<1x128xf32, #tpu.memory_space<vmem>>, vector<1x128xf32>
    %cst_13 = arith.constant dense<0.000000e+00> : vector<128x128xf32>
    %14 = tpu.matmul %11, %12, %cst_13 {dimension_numbers = #tpu.dot_dimension_numbers<[1], [0], [0], [1], [0, 0, 1, 1], [], []>} : vector<128x128xbf16>, vector<128x128xbf16>, vector<128x128xf32> -> vector<128x128xf32>
    %15 = arith.truncf %14 : vector<128x128xf32> to vector<128x128xbf16>
    %cst_14 = arith.constant dense<0.000000e+00> : vector<128x128xf32>
    %16 = tpu.matmul %0, %15, %cst_14 {dimension_numbers = #tpu.dot_dimension_numbers<[1], [0], [0], [1], [0, 0, 1, 1], [], []>} : vector<128x128xbf16>, vector<128x128xbf16>, vector<128x128xf32> -> vector<128x128xf32>
    %17 = vector.broadcast %13 : vector<1x128xf32> to vector<128x128xf32>
    %18 = arith.addf %16, %17 : vector<128x128xf32>
    %cst_15 = arith.constant 0.000000e+00 : f32
    %19 = vector.broadcast %cst_15 : f32 to vector<128x128xf32>
    %20 = arith.maximumf %18, %19 : vector<128x128xf32>
    %21 = arith.truncf %20 : vector<128x128xf32> to vector<128x128xbf16>
    %c0_16 = arith.constant 0 : index
    %c0_17 = arith.constant 0 : index
    %22 = vector.load %arg6[%c0_16, %c0_17] : memref<128x128xbf16, #tpu.memory_space<vmem>>, vector<128x128xbf16>
    %c0_18 = arith.constant 0 : index
    %c0_19 = arith.constant 0 : index
    %23 = vector.load %arg7[%c0_18, %c0_19] : memref<1x128xf32, #tpu.memory_space<vmem>>, vector<1x128xf32>
    %cst_20 = arith.constant dense<0.000000e+00> : vector<128x128xf32>
    %24 = tpu.matmul %21, %22, %cst_20 {dimension_numbers = #tpu.dot_dimension_numbers<[1], [0], [0], [1], [0, 0, 1, 1], [], []>} : vector<128x128xbf16>, vector<128x128xbf16>, vector<128x128xf32> -> vector<128x128xf32>
    %25 = arith.truncf %24 : vector<128x128xf32> to vector<128x128xbf16>
    %cst_21 = arith.constant dense<0.000000e+00> : vector<128x128xf32>
    %26 = tpu.matmul %0, %25, %cst_21 {dimension_numbers = #tpu.dot_dimension_numbers<[1], [0], [0], [1], [0, 0, 1, 1], [], []>} : vector<128x128xbf16>, vector<128x128xbf16>, vector<128x128xf32> -> vector<128x128xf32>
    %27 = vector.broadcast %23 : vector<1x128xf32> to vector<128x128xf32>
    %28 = arith.addf %26, %27 : vector<128x128xf32>
    %29 = tpu.iota {dimensions = array<i32: 1>} : vector<128x128xi32>
    %c10_i32 = arith.constant 10 : i32
    %30 = vector.broadcast %c10_i32 : i32 to vector<128x128xi32>
    %31 = arith.cmpi slt, %29, %30 : vector<128x128xi32>
    %cst_22 = arith.constant -1.000000e+30 : f32
    %32 = vector.broadcast %cst_22 : f32 to vector<128x128xf32>
    %33 = arith.select %31, %28, %32 : vector<128x128xi1>, vector<128x128xf32>
    %cst_23 = arith.constant dense<0xFF800000> : vector<128xf32>
    %34 = vector.multi_reduction <maximumf>, %33, %cst_23 [1] : vector<128x128xf32> to vector<128xf32>
    %35 = vector.shape_cast %34 : vector<128xf32> to vector<128x1xf32>
    %36 = vector.broadcast %35 : vector<128x1xf32> to vector<128x128xf32>
    %37 = arith.subf %33, %36 : vector<128x128xf32>
    %38 = math.exp %37 : vector<128x128xf32>
    %cst_24 = arith.constant 0.000000e+00 : f32
    %39 = vector.broadcast %cst_24 : f32 to vector<128x128xf32>
    %40 = arith.select %31, %38, %39 : vector<128x128xi1>, vector<128x128xf32>
    %cst_25 = arith.constant dense<0.000000e+00> : vector<128xf32>
    %41 = vector.multi_reduction <add>, %40, %cst_25 [1] : vector<128x128xf32> to vector<128xf32>
    %42 = vector.shape_cast %41 : vector<128xf32> to vector<128x1xf32>
    %43 = math.log %42 : vector<128x1xf32>
    %44 = vector.broadcast %43 : vector<128x1xf32> to vector<128x128xf32>
    %45 = arith.subf %37, %44 : vector<128x128xf32>
    %cst_26 = arith.constant 0.000000e+00 : f32
    %46 = vector.broadcast %cst_26 : f32 to vector<128x128xf32>
    %47 = arith.select %31, %45, %46 : vector<128x128xi1>, vector<128x128xf32>
    %c0_27 = arith.constant 0 : index
    %c0_28 = arith.constant 0 : index
    %48 = vector.load %arg8[%c0_27, %c0_28] : memref<128x128xf32, #tpu.memory_space<vmem>>, vector<128x128xf32>
    tpu.vector_store %arg8[%c0_27, %c0_28], %47 {strides = array<i32>} : memref<128x128xf32, #tpu.memory_space<vmem>>, vector<128x128xf32>,
    return
  }
}

</mosaic_0001>

<llo_original>
// kernel: multilayer_gcn_forward.1
$region0: #{multilayer_gcn_forward.1}
  #allocation0 [shape = 'u32[]', space=smem, size = 0x4, offset = 0x4, fixed_abs, tag = 'smem constant byte address 0x4 - core index']
  #allocation1 [shape = 'u32[144,128]{1,0:T(1,128)}', space=vmem, size = 0x12000, scoped, tag = 'internal scratch']
  %s0 = inlined_call_operand.vmem [shape: bf16[128,128], index: 0, kind: input, shape index: {}]
  %s1 = inlined_call_operand.vmem [shape: bf16[128,128], index: 1, kind: input, shape index: {}]
  %s2 = inlined_call_operand.vmem [shape: bf16[128,128], index: 2, kind: input, shape index: {}]
  %s3 = inlined_call_operand.vmem [shape: f32[1,128], index: 3, kind: input, shape index: {}]
  %s4 = inlined_call_operand.vmem [shape: bf16[128,128], index: 4, kind: input, shape index: {}]
  %s5 = inlined_call_operand.vmem [shape: f32[1,128], index: 5, kind: input, shape index: {}]
  %s6 = inlined_call_operand.vmem [shape: bf16[128,128], index: 6, kind: input, shape index: {}]
  %s7 = inlined_call_operand.vmem [shape: f32[1,128], index: 7, kind: input, shape index: {}]
  %s8 = inlined_call_operand.vmem [shape: f32[128,128], index: 8, kind: output, shape index: {}]
  %s9 = sld [smem:[#allocation0]]
  $region42: #{multilayer_gcn_forward.1} parent=0
    _
  %s11 = ssub.s32 1, %s9
  %s12 = scalar_select 0, %s11, %s9
  // Predicated region
  $region2: #{multilayer_gcn_forward.1} parent=0 // pred_check
    _
  $region3: #{multilayer_gcn_forward.1} parent=0 // pred_check_branch
    %14 = sbr.rel (0) target = $region5
  $region4: #{multilayer_gcn_forward.1} parent=0 // pred_region
    _
  $region5: #{multilayer_gcn_forward.1} parent=0 // pred_fallthru
    _
  // Predicated region
  $region6: #{multilayer_gcn_forward.1} parent=0 // pred_check
    _
  $region7: #{multilayer_gcn_forward.1} parent=0 // pred_check_branch
    %16 = sbr.rel (0) target = $region9
  $region8: #{multilayer_gcn_forward.1} parent=0 // pred_region
    _
  $region9: #{multilayer_gcn_forward.1} parent=0 // pred_fallthru
    _
  // Predicated region
  $region10: #{multilayer_gcn_forward.1} parent=0 // pred_check
    _
  $region11: #{multilayer_gcn_forward.1} parent=0 // pred_check_branch
    %18 = sbr.rel (0) target = $region13
  $region12: #{multilayer_gcn_forward.1} parent=0 // pred_region
    _
  $region13: #{multilayer_gcn_forward.1} parent=0 // pred_fallthru
    _
  // Predicated region
  $region14: #{multilayer_gcn_forward.1} parent=0 // pred_check
    _
  $region15: #{multilayer_gcn_forward.1} parent=0 // pred_check_branch
    %20 = sbr.rel (0) target = $region17
  $region16: #{multilayer_gcn_forward.1} parent=0 // pred_region
    _
  $region17: #{multilayer_gcn_forward.1} parent=0 // pred_fallthru
    _
  // Predicated region
  $region18: #{multilayer_gcn_forward.1} parent=0 // pred_check
    _
  $region19: #{multilayer_gcn_forward.1} parent=0 // pred_check_branch
    %22 = sbr.rel (0) target = $region21
  $region20: #{multilayer_gcn_forward.1} parent=0 // pred_region
    _
  $region21: #{multilayer_gcn_forward.1} parent=0 // pred_fallthru
    _
  // Predicated region
  $region22: #{multilayer_gcn_forward.1} parent=0 // pred_check
    _
  $region23: #{multilayer_gcn_forward.1} parent=0 // pred_check_branch
    %24 = sbr.rel (0) target = $region25
  $region24: #{multilayer_gcn_forward.1} parent=0 // pred_region
    _
  $region25: #{multilayer_gcn_forward.1} parent=0 // pred_fallthru
    _
  // Predicated region
  $region26: #{multilayer_gcn_forward.1} parent=0 // pred_check
    _
  $region27: #{multilayer_gcn_forward.1} parent=0 // pred_check_branch
    %26 = sbr.rel (0) target = $region29
  $region28: #{multilayer_gcn_forward.1} parent=0 // pred_region
    _
  $region29: #{multilayer_gcn_forward.1} parent=0 // pred_fallthru
    _
  // Predicated region
  $region30: #{multilayer_gcn_forward.1} parent=0 // pred_check
    _
  $region31: #{multilayer_gcn_forward.1} parent=0 // pred_check_branch
    %28 = sbr.rel (0) target = $region33
  $region32: #{multilayer_gcn_forward.1} parent=0 // pred_region
    _
  $region33: #{multilayer_gcn_forward.1} parent=0 // pred_fallthru
    _
  %v30 = vld [vmem:[%s0] sm:$0xf]
  %v31 = vld [vmem:[%s0 + $0x4] sm:$0xf]
  %v32 = vld [vmem:[%s0 + $0x8] sm:$0xf]
  %v33 = vld [vmem:[%s0 + $0xc] sm:$0xf]
  %v34 = vld [vmem:[%s0 + $0x10] sm:$0xf]
  %v35 = vld [vmem:[%s0 + $0x14] sm:$0xf]
  %v36 = vld [vmem:[%s0 + $0x18] sm:$0xf]
  %v37 = vld [vmem:[%s0 + $0x1c] sm:$0xf]
  %v38 = vld [vmem:[%s0 + $0x20] sm:$0xf]
  %v39 = vld [vmem:[%s0 + $0x24] sm:$0xf]
  %v40 = vld [vmem:[%s0 + $0x28] sm:$0xf]
  %v41 = vld [vmem:[%s0 + $0x2c] sm:$0xf]
  %v42 = vld [vmem:[%s0 + $0x30] sm:$0xf]
  %v43 = vld [vmem:[%s0 + $0x34] sm:$0xf]
  %v44 = vld [vmem:[%s0 + $0x38] sm:$0xf]
  %v45 = vld [vmem:[%s0 + $0x3c] sm:$0xf]
  %v46 = vld [vmem:[%s1] sm:$0xf]
  %v47 = vld [vmem:[%s1 + $0x4] sm:$0xf]
  %v48 = vld [vmem:[%s1 + $0x8] sm:$0xf]
  %v49 = vld [vmem:[%s1 + $0xc] sm:$0xf]
  %v50 = vld [vmem:[%s1 + $0x10] sm:$0xf]
  %v51 = vld [vmem:[%s1 + $0x14] sm:$0xf]
  %v52 = vld [vmem:[%s1 + $0x18] sm:$0xf]
  %v53 = vld [vmem:[%s1 + $0x1c] sm:$0xf]
  %v54 = vld [vmem:[%s1 + $0x20] sm:$0xf]
  %v55 = vld [vmem:[%s1 + $0x24] sm:$0xf]
  %v56 = vld [vmem:[%s1 + $0x28] sm:$0xf]
  %v57 = vld [vmem:[%s1 + $0x2c] sm:$0xf]
  %v58 = vld [vmem:[%s1 + $0x30] sm:$0xf]
  %v59 = vld [vmem:[%s1 + $0x34] sm:$0xf]
  %v60 = vld [vmem:[%s1 + $0x38] sm:$0xf]
  %v61 = vld [vmem:[%s1 + $0x3c] sm:$0xf]
  %v62 = vld [vmem:[%s2] sm:$0xf]
  %v63 = vld [vmem:[%s2 + $0x4] sm:$0xf]
  %v64 = vld [vmem:[%s2 + $0x8] sm:$0xf]
  %v65 = vld [vmem:[%s2 + $0xc] sm:$0xf]
  %v66 = vld [vmem:[%s2 + $0x10] sm:$0xf]
  %v67 = vld [vmem:[%s2 + $0x14] sm:$0xf]
  %v68 = vld [vmem:[%s2 + $0x18] sm:$0xf]
  %v69 = vld [vmem:[%s2 + $0x1c] sm:$0xf]
  %v70 = vld [vmem:[%s2 + $0x20] sm:$0xf]
  %v71 = vld [vmem:[%s2 + $0x24] sm:$0xf]
  %v72 = vld [vmem:[%s2 + $0x28] sm:$0xf]
  %v73 = vld [vmem:[%s2 + $0x2c] sm:$0xf]
  %v74 = vld [vmem:[%s2 + $0x30] sm:$0xf]
  %v75 = vld [vmem:[%s2 + $0x34] sm:$0xf]
  %v76 = vld [vmem:[%s2 + $0x38] sm:$0xf]
  %v77 = vld [vmem:[%s2 + $0x3c] sm:$0xf]
  %v78 = vld [vmem:[%s3] sm:$0x1]
  %v95 = vunpack.c.l.b16 %v46
  %v96 = vunpack.c.l.b16 %v47
  %v97 = vunpack.c.l.b16 %v48
  %v98 = vunpack.c.l.b16 %v49
  %v99 = vunpack.c.l.b16 %v50
  %v100 = vunpack.c.l.b16 %v51
  %v101 = vunpack.c.l.b16 %v52
  %v102 = vunpack.c.l.b16 %v53
  %v103 = vunpack.c.l.b16 %v54
  %v104 = vunpack.c.l.b16 %v55
  %v105 = vunpack.c.l.b16 %v56
  %v106 = vunpack.c.l.b16 %v57
  %v107 = vunpack.c.l.b16 %v58
  %v108 = vunpack.c.l.b16 %v59
  %v109 = vunpack.c.l.b16 %v60
  %v110 = vunpack.c.l.b16 %v61
  %v111 = vpack.c.b16 %v96, %v95
  %v112 = vpack.c.b16 %v98, %v97
  %v113 = vpack.c.b16 %v100, %v99
  %v114 = vpack.c.b16 %v102, %v101
  %v115 = vpack.c.b16 %v104, %v103
  %v116 = vpack.c.b16 %v106, %v105
  %v117 = vpack.c.b16 %v108, %v107
  %v118 = vpack.c.b16 %v110, %v109
  %v143 = vunpack.c.l.b16 %v62
  %v144 = vunpack.c.l.b16 %v63
  %v145 = vunpack.c.l.b16 %v64
  %v146 = vunpack.c.l.b16 %v65
  %v147 = vunpack.c.l.b16 %v66
  %v148 = vunpack.c.l.b16 %v67
  %v149 = vunpack.c.l.b16 %v68
  %v150 = vunpack.c.l.b16 %v69
  %v151 = vunpack.c.l.b16 %v70
  %v152 = vunpack.c.l.b16 %v71
  %v153 = vunpack.c.l.b16 %v72
  %v154 = vunpack.c.l.b16 %v73
  %v155 = vunpack.c.l.b16 %v74
  %v156 = vunpack.c.l.b16 %v75
  %v157 = vunpack.c.l.b16 %v76
  %v158 = vunpack.c.l.b16 %v77
  %v159 = vpack.c.b16 %v144, %v143
  %v160 = vpack.c.b16 %v146, %v145
  %v161 = vpack.c.b16 %v148, %v147
  %v162 = vpack.c.b16 %v150, %v149
  %v163 = vpack.c.b16 %v152, %v151
  %v164 = vpack.c.b16 %v154, %v153
  %v165 = vpack.c.b16 %v156, %v155
  %v166 = vpack.c.b16 %v158, %v157
  %175 = vmatprep.subr.bf16.mxu0 0
  %176 = vmatpush1.bf16.msra.mxu0 %v166
  %177 = vmatprep.subr.bf16.mxu0 0
  %178 = vmatpush1.bf16.msra.mxu0 %v165
  %179 = vmatprep.subr.bf16.mxu0 0
  %180 = vmatpush1.bf16.msra.mxu0 %v164
  %181 = vmatprep.subr.bf16.mxu0 0
  %182 = vmatpush1.bf16.msra.mxu0 %v163
  %183 = vmatprep.subr.bf16.mxu0 0
  %184 = vmatpush1.bf16.msra.mxu0 %v162
  %185 = vmatprep.subr.bf16.mxu0 0
  %186 = vmatpush1.bf16.msra.mxu0 %v161
  %187 = vmatprep.subr.bf16.mxu0 0
  %188 = vmatpush1.bf16.msra.mxu0 %v160
  %189 = vmatprep.subr.bf16.mxu0 0
  %190 = vmatpush1.bf16.msra.mxu0 %v159
  %191 = vmatprep.subr.bf16.mxu0 0
  %192 = vmatpush2.bf16.msra.mxu0 0
  %193 = vmatprep.subr.bf16.mxu0 0
  %194 = vmatpush2.bf16.msra.mxu0 0
  %195 = vmatprep.subr.bf16.mxu0 0
  %196 = vmatpush2.bf16.msra.mxu0 0
  %197 = vmatprep.subr.bf16.mxu0 0
  %198 = vmatpush2.bf16.msra.mxu0 0
  %199 = vmatprep.subr.bf16.mxu0 0
  %200 = vmatpush2.bf16.msra.mxu0 0
  %201 = vmatprep.subr.bf16.mxu0 0
  %202 = vmatpush2.bf16.msra.mxu0 0
  %203 = vmatprep.subr.bf16.mxu0 0
  %204 = vmatpush2.bf16.msra.mxu0 0
  %205 = vmatprep.subr.bf16.mxu0 0
  %206 = vmatpush2.bf16.msra.mxu0 0
  %207 = vmatprep.mubr.bf16.mxu0 0
  %208 = vmatmul.mubr.bf16.gmra.mxu0 %v111
  %v209 = vpop.f32.mrf.mxu0
  %v210 = vadd.f32 0.0, %v209
  %v211 = vpop.f32.mrf.mxu0
  %v212 = vpop.f32.mrf.mxu0
  %v213 = vadd.f32 0.0, %v212
  %v214 = vpop.f32.mrf.mxu0
  %215 = vmatprep.mubr.bf16.mxu0 0
  %216 = vmatmul.mubr.bf16.gmra.mxu0 %v112
  %v217 = vpop.f32.mrf.mxu0
  %v218 = vadd.f32 0.0, %v217
  %v219 = vpop.f32.mrf.mxu0
  %v220 = vpop.f32.mrf.mxu0
  %v221 = vadd.f32 0.0, %v220
  %v222 = vpop.f32.mrf.mxu0
  %223 = vmatprep.mubr.bf16.mxu0 0
  %224 = vmatmul.mubr.bf16.gmra.mxu0 %v113
  %v225 = vpop.f32.mrf.mxu0
  %v226 = vadd.f32 0.0, %v225
  %v227 = vpop.f32.mrf.mxu0
  %v228 = vpop.f32.mrf.mxu0
  %v229 = vadd.f32 0.0, %v228
  %v230 = vpop.f32.mrf.mxu0
  %231 = vmatprep.mubr.bf16.mxu0 0
  %232 = vmatmul.mubr.bf16.gmra.mxu0 %v114
  %v233 = vpop.f32.mrf.mxu0
  %v234 = vadd.f32 0.0, %v233
  %v235 = vpop.f32.mrf.mxu0
  %v236 = vpop.f32.mrf.mxu0
  %v237 = vadd.f32 0.0, %v236
  %v238 = vpop.f32.mrf.mxu0
  %239 = vmatprep.mubr.bf16.mxu0 0
  %240 = vmatmul.mubr.bf16.gmra.mxu0 %v115
  %v241 = vpop.f32.mrf.mxu0
  %v242 = vadd.f32 0.0, %v241
  %v243 = vpop.f32.mrf.mxu0
  %v244 = vpop.f32.mrf.mxu0
  %v245 = vadd.f32 0.0, %v244
  %v246 = vpop.f32.mrf.mxu0
  %247 = vmatprep.mubr.bf16.mxu0 0
  %248 = vmatmul.mubr.bf16.gmra.mxu0 %v116
  %v249 = vpop.f32.mrf.mxu0
  %v250 = vadd.f32 0.0, %v249
  %v251 = vpop.f32.mrf.mxu0
  %v252 = vpop.f32.mrf.mxu0
  %v253 = vadd.f32 0.0, %v252
  %v254 = vpop.f32.mrf.mxu0
  %255 = vmatprep.mubr.bf16.mxu0 0
  %256 = vmatmul.mubr.bf16.gmra.mxu0 %v117
  %v257 = vpop.f32.mrf.mxu0
  %v258 = vadd.f32 0.0, %v257
  %v259 = vpop.f32.mrf.mxu0
  %v260 = vpop.f32.mrf.mxu0
  %v261 = vadd.f32 0.0, %v260
  %v262 = vpop.f32.mrf.mxu0
  %263 = vmatprep.mubr.bf16.mxu0 0
  %264 = vmatmul.mubr.bf16.gmra.mxu0 %v118
  %v265 = vpop.f32.mrf.mxu0
  %v266 = vadd.f32 0.0, %v265
  %v267 = vpop.f32.mrf.mxu0
  %v268 = vpop.f32.mrf.mxu0
  %v269 = vadd.f32 0.0, %v268
  %v270 = vpop.f32.mrf.mxu0
  %271 = vdwg.mxu0
  %v272 = vpack.c.bf16 %v213, %v210
  %v273 = vpack.c.bf16 %v221, %v218
  %v274 = vpack.c.bf16 %v229, %v226
  %v275 = vpack.c.bf16 %v237, %v234
  %v276 = vpack.c.bf16 %v245, %v242
  %v277 = vpack.c.bf16 %v253, %v250
  %v278 = vpack.c.bf16 %v261, %v258
  %v279 = vpack.c.bf16 %v269, %v266
  %v281 = vlaneseq
  %v282 = vshrl.u32 %v281, 7
  %v283 = vsub.s32 0, %v282
  %v284 = vrot.slane %v78, %v283
  %v302 = vunpack.c.l.b16 %v30
  %v303 = vunpack.c.l.b16 %v31
  %v304 = vunpack.c.l.b16 %v32
  %v305 = vunpack.c.l.b16 %v33
  %v306 = vunpack.c.l.b16 %v34
  %v307 = vunpack.c.l.b16 %v35
  %v308 = vunpack.c.l.b16 %v36
  %v309 = vunpack.c.l.b16 %v37
  %v310 = vunpack.c.l.b16 %v38
  %v311 = vunpack.c.l.b16 %v39
  %v312 = vunpack.c.l.b16 %v40
  %v313 = vunpack.c.l.b16 %v41
  %v314 = vunpack.c.l.b16 %v42
  %v315 = vunpack.c.l.b16 %v43
  %v316 = vunpack.c.l.b16 %v44
  %v317 = vunpack.c.l.b16 %v45
  %v318 = vpack.c.b16 %v303, %v302
  %v319 = vpack.c.b16 %v305, %v304
  %v320 = vpack.c.b16 %v307, %v306
  %v321 = vpack.c.b16 %v309, %v308
  %v322 = vpack.c.b16 %v311, %v310
  %v323 = vpack.c.b16 %v313, %v312
  %v324 = vpack.c.b16 %v315, %v314
  %v325 = vpack.c.b16 %v317, %v316
  %334 = vmatprep.subr.bf16.mxu0 0
  %335 = vmatpush1.bf16.msra.mxu0 %v279
  %336 = vmatprep.subr.bf16.mxu0 0
  %337 = vmatpush1.bf16.msra.mxu0 %v278
  %338 = vmatprep.subr.bf16.mxu0 0
  %339 = vmatpush1.bf16.msra.mxu0 %v277
  %340 = vmatprep.subr.bf16.mxu0 0
  %341 = vmatpush1.bf16.msra.mxu0 %v276
  %342 = vmatprep.subr.bf16.mxu0 0
  %343 = vmatpush1.bf16.msra.mxu0 %v275
  %344 = vmatprep.subr.bf16.mxu0 0
  %345 = vmatpush1.bf16.msra.mxu0 %v274
  %346 = vmatprep.subr.bf16.mxu0 0
  %347 = vmatpush1.bf16.msra.mxu0 %v273
  %348 = vmatprep.subr.bf16.mxu0 0
  %349 = vmatpush1.bf16.msra.mxu0 %v272
  %350 = vmatprep.subr.bf16.mxu0 0
  %351 = vmatpush2.bf16.msra.mxu0 0
  %352 = vmatprep.subr.bf16.mxu0 0
  %353 = vmatpush2.bf16.msra.mxu0 0
  %354 = vmatprep.subr.bf16.mxu0 0
  %355 = vmatpush2.bf16.msra.mxu0 0
  %356 = vmatprep.subr.bf16.mxu0 0
  %357 = vmatpush2.bf16.msra.mxu0 0
  %358 = vmatprep.subr.bf16.mxu0 0
  %359 = vmatpush2.bf16.msra.mxu0 0
  %360 = vmatprep.subr.bf16.mxu0 0
  %361 = vmatpush2.bf16.msra.mxu0 0
  %362 = vmatprep.subr.bf16.mxu0 0
  %363 = vmatpush2.bf16.msra.mxu0 0
  %364 = vmatprep.subr.bf16.mxu0 0
  %365 = vmatpush2.bf16.msra.mxu0 0
  %366 = vmatprep.mubr.bf16.mxu0 0
  %367 = vmatmul.mubr.bf16.gmra.mxu0 %v318
  %v368 = vpop.f32.mrf.mxu0
  %v369 = vadd.f32 %v284, %v368
  %v370 = vpop.f32.mrf.mxu0
  %v371 = vpop.f32.mrf.mxu0
  %v372 = vadd.f32 %v284, %v371
  %v373 = vpop.f32.mrf.mxu0
  %374 = vmatprep.mubr.bf16.mxu0 0
  %375 = vmatmul.mubr.bf16.gmra.mxu0 %v319
  %v376 = vpop.f32.mrf.mxu0
  %v377 = vadd.f32 %v284, %v376
  %v378 = vpop.f32.mrf.mxu0
  %v379 = vpop.f32.mrf.mxu0
  %v380 = vadd.f32 %v284, %v379
  %v381 = vpop.f32.mrf.mxu0
  %382 = vmatprep.mubr.bf16.mxu0 0
  %383 = vmatmul.mubr.bf16.gmra.mxu0 %v320
  %v384 = vpop.f32.mrf.mxu0
  %v385 = vadd.f32 %v284, %v384
  %v386 = vpop.f32.mrf.mxu0
  %v387 = vpop.f32.mrf.mxu0
  %v388 = vadd.f32 %v284, %v387
  %v389 = vpop.f32.mrf.mxu0
  %390 = vmatprep.mubr.bf16.mxu0 0
  %391 = vmatmul.mubr.bf16.gmra.mxu0 %v321
  %v392 = vpop.f32.mrf.mxu0
  %v393 = vadd.f32 %v284, %v392
  %v394 = vpop.f32.mrf.mxu0
  %v395 = vpop.f32.mrf.mxu0
  %v396 = vadd.f32 %v284, %v395
  %v397 = vpop.f32.mrf.mxu0
  %398 = vmatprep.mubr.bf16.mxu0 0
  %399 = vmatmul.mubr.bf16.gmra.mxu0 %v322
  %v400 = vpop.f32.mrf.mxu0
  %v401 = vadd.f32 %v284, %v400
  %v402 = vpop.f32.mrf.mxu0
  %v403 = vpop.f32.mrf.mxu0
  %v404 = vadd.f32 %v284, %v403
  %v405 = vpop.f32.mrf.mxu0
  %406 = vmatprep.mubr.bf16.mxu0 0
  %407 = vmatmul.mubr.bf16.gmra.mxu0 %v323
  %v408 = vpop.f32.mrf.mxu0
  %v409 = vadd.f32 %v284, %v408
  %v410 = vpop.f32.mrf.mxu0
  %v411 = vpop.f32.mrf.mxu0
  %v412 = vadd.f32 %v284, %v411
  %v413 = vpop.f32.mrf.mxu0
  %414 = vmatprep.mubr.bf16.mxu0 0
  %415 = vmatmul.mubr.bf16.gmra.mxu0 %v324
  %v416 = vpop.f32.mrf.mxu0
  %v417 = vadd.f32 %v284, %v416
  %v418 = vpop.f32.mrf.mxu0
  %v419 = vpop.f32.mrf.mxu0
  %v420 = vadd.f32 %v284, %v419
  %v421 = vpop.f32.mrf.mxu0
  %422 = vmatprep.mubr.bf16.mxu0 0
  %423 = vmatmul.mubr.bf16.gmra.mxu0 %v325
  %v424 = vpop.f32.mrf.mxu0
  %v425 = vadd.f32 %v284, %v424
  %v426 = vpop.f32.mrf.mxu0
  %v427 = vpop.f32.mrf.mxu0
  %v428 = vadd.f32 %v284, %v427
  %v429 = vpop.f32.mrf.mxu0
  %430 = vdwg.mxu0
  %v431 = vmax.f32 %v369, 0.0
  %v432 = vmax.f32 %v372, 0.0
  %v433 = vmax.f32 %v377, 0.0
  %v434 = vmax.f32 %v380, 0.0
  %v435 = vmax.f32 %v385, 0.0
  %v436 = vmax.f32 %v388, 0.0
  %v437 = vmax.f32 %v393, 0.0
  %v438 = vmax.f32 %v396, 0.0
  %v439 = vmax.f32 %v401, 0.0
  %v440 = vmax.f32 %v404, 0.0
  %v441 = vmax.f32 %v409, 0.0
  %v442 = vmax.f32 %v412, 0.0
  %v443 = vmax.f32 %v417, 0.0
  %v444 = vmax.f32 %v420, 0.0
  %v445 = vmax.f32 %v425, 0.0
  %v446 = vmax.f32 %v428, 0.0
  %v447 = vpack.c.bf16 %v432, %v431
  %v448 = vpack.c.bf16 %v434, %v433
  %v449 = vpack.c.bf16 %v436, %v435
  %v450 = vpack.c.bf16 %v438, %v437
  %v451 = vpack.c.bf16 %v440, %v439
  %v452 = vpack.c.bf16 %v442, %v441
  %v453 = vpack.c.bf16 %v444, %v443
  %v454 = vpack.c.bf16 %v446, %v445
  %v455 = vld [vmem:[%s4] sm:$0xf]
  %v456 = vld [vmem:[%s4 + $0x4] sm:$0xf]
  %v457 = vld [vmem:[%s4 + $0x8] sm:$0xf]
  %v458 = vld [vmem:[%s4 + $0xc] sm:$0xf]
  %v459 = vld [vmem:[%s4 + $0x10] sm:$0xf]
  %v460 = vld [vmem:[%s4 + $0x14] sm:$0xf]
  %v461 = vld [vmem:[%s4 + $0x18] sm:$0xf]
  %v462 = vld [vmem:[%s4 + $0x1c] sm:$0xf]
  %v463 = vld [vmem:[%s4 + $0x20] sm:$0xf]
  %v464 = vld [vmem:[%s4 + $0x24] sm:$0xf]
  %v465 = vld [vmem:[%s4 + $0x28] sm:$0xf]
  %v466 = vld [vmem:[%s4 + $0x2c] sm:$0xf]
  %v467 = vld [vmem:[%s4 + $0x30] sm:$0xf]
  %v468 = vld [vmem:[%s4 + $0x34] sm:$0xf]
  %v469 = vld [vmem:[%s4 + $0x38] sm:$0xf]
  %v470 = vld [vmem:[%s4 + $0x3c] sm:$0xf]
  %v471 = vld [vmem:[%s5] sm:$0x1]
  %v488 = vunpack.c.l.b16 %v455
  %v489 = vunpack.c.l.b16 %v456
  %v490 = vunpack.c.l.b16 %v457
  %v491 = vunpack.c.l.b16 %v458
  %v492 = vunpack.c.l.b16 %v459
  %v493 = vunpack.c.l.b16 %v460
  %v494 = vunpack.c.l.b16 %v461
  %v495 = vunpack.c.l.b16 %v462
  %v496 = vunpack.c.l.b16 %v463
  %v497 = vunpack.c.l.b16 %v464
  %v498 = vunpack.c.l.b16 %v465
  %v499 = vunpack.c.l.b16 %v466
  %v500 = vunpack.c.l.b16 %v467
  %v501 = vunpack.c.l.b16 %v468
  %v502 = vunpack.c.l.b16 %v469
  %v503 = vunpack.c.l.b16 %v470
  %v504 = vpack.c.b16 %v489, %v488
  %v505 = vpack.c.b16 %v491, %v490
  %v506 = vpack.c.b16 %v493, %v492
  %v507 = vpack.c.b16 %v495, %v494
  %v508 = vpack.c.b16 %v497, %v496
  %v509 = vpack.c.b16 %v499, %v498
  %v510 = vpack.c.b16 %v501, %v500
  %v511 = vpack.c.b16 %v503, %v502
  %520 = vmatprep.subr.bf16.mxu0 0
  %521 = vmatpush1.bf16.msra.mxu0 %v511
  %522 = vmatprep.subr.bf16.mxu0 0
  %523 = vmatpush1.bf16.msra.mxu0 %v510
  %524 = vmatprep.subr.bf16.mxu0 0
  %525 = vmatpush1.bf16.msra.mxu0 %v509
  %526 = vmatprep.subr.bf16.mxu0 0
  %527 = vmatpush1.bf16.msra.mxu0 %v508
  %528 = vmatprep.subr.bf16.mxu0 0
  %529 = vmatpush1.bf16.msra.mxu0 %v507
  %530 = vmatprep.subr.bf16.mxu0 0
  %531 = vmatpush1.bf16.msra.mxu0 %v506
  %532 = vmatprep.subr.bf16.mxu0 0
  %533 = vmatpush1.bf16.msra.mxu0 %v505
  %534 = vmatprep.subr.bf16.mxu0 0
  %535 = vmatpush1.bf16.msra.mxu0 %v504
  %536 = vmatprep.subr.bf16.mxu0 0
  %537 = vmatpush2.bf16.msra.mxu0 0
  %538 = vmatprep.subr.bf16.mxu0 0
  %539 = vmatpush2.bf16.msra.mxu0 0
  %540 = vmatprep.subr.bf16.mxu0 0
  %541 = vmatpush2.bf16.msra.mxu0 0
  %542 = vmatprep.subr.bf16.mxu0 0
  %543 = vmatpush2.bf16.msra.mxu0 0
  %544 = vmatprep.subr.bf16.mxu0 0
  %545 = vmatpush2.bf16.msra.mxu0 0
  %546 = vmatprep.subr.bf16.mxu0 0
  %547 = vmatpush2.bf16.msra.mxu0 0
  %548 = vmatprep.subr.bf16.mxu0 0
  %549 = vmatpush2.bf16.msra.mxu0 0
  %550 = vmatprep.subr.bf16.mxu0 0
  %551 = vmatpush2.bf16.msra.mxu0 0
  %552 = vmatprep.mubr.bf16.mxu0 0
  %553 = vmatmul.mubr.bf16.gmra.mxu0 %v447
  %v554 = vpop.f32.mrf.mxu0
  %v555 = vadd.f32 0.0, %v554
  %v556 = vpop.f32.mrf.mxu0
  %v557 = vpop.f32.mrf.mxu0
  %v558 = vadd.f32 0.0, %v557
  %v559 = vpop.f32.mrf.mxu0
  %560 = vmatprep.mubr.bf16.mxu0 0
  %561 = vmatmul.mubr.bf16.gmra.mxu0 %v448
  %v562 = vpop.f32.mrf.mxu0
  %v563 = vadd.f32 0.0, %v562
  %v564 = vpop.f32.mrf.mxu0
  %v565 = vpop.f32.mrf.mxu0
  %v566 = vadd.f32 0.0, %v565
  %v567 = vpop.f32.mrf.mxu0
  %568 = vmatprep.mubr.bf16.mxu0 0
  %569 = vmatmul.mubr.bf16.gmra.mxu0 %v449
  %v570 = vpop.f32.mrf.mxu0
  %v571 = vadd.f32 0.0, %v570
  %v572 = vpop.f32.mrf.mxu0
  %v573 = vpop.f32.mrf.mxu0
  %v574 = vadd.f32 0.0, %v573
  %v575 = vpop.f32.mrf.mxu0
  %576 = vmatprep.mubr.bf16.mxu0 0
  %577 = vmatmul.mubr.bf16.gmra.mxu0 %v450
  %v578 = vpop.f32.mrf.mxu0
  %v579 = vadd.f32 0.0, %v578
  %v580 = vpop.f32.mrf.mxu0
  %v581 = vpop.f32.mrf.mxu0
  %v582 = vadd.f32 0.0, %v581
  %v583 = vpop.f32.mrf.mxu0
  %584 = vmatprep.mubr.bf16.mxu0 0
  %585 = vmatmul.mubr.bf16.gmra.mxu0 %v451
  %v586 = vpop.f32.mrf.mxu0
  %v587 = vadd.f32 0.0, %v586
  %v588 = vpop.f32.mrf.mxu0
  %v589 = vpop.f32.mrf.mxu0
  %v590 = vadd.f32 0.0, %v589
  %v591 = vpop.f32.mrf.mxu0
  %592 = vmatprep.mubr.bf16.mxu0 0
  %593 = vmatmul.mubr.bf16.gmra.mxu0 %v452
  %v594 = vpop.f32.mrf.mxu0
  %v595 = vadd.f32 0.0, %v594
  %v596 = vpop.f32.mrf.mxu0
  %v597 = vpop.f32.mrf.mxu0
  %v598 = vadd.f32 0.0, %v597
  %v599 = vpop.f32.mrf.mxu0
  %600 = vmatprep.mubr.bf16.mxu0 0
  %601 = vmatmul.mubr.bf16.gmra.mxu0 %v453
  %v602 = vpop.f32.mrf.mxu0
  %v603 = vadd.f32 0.0, %v602
  %v604 = vpop.f32.mrf.mxu0
  %v605 = vpop.f32.mrf.mxu0
  %v606 = vadd.f32 0.0, %v605
  %v607 = vpop.f32.mrf.mxu0
  %608 = vmatprep.mubr.bf16.mxu0 0
  %609 = vmatmul.mubr.bf16.gmra.mxu0 %v454
  %v610 = vpop.f32.mrf.mxu0
  %v611 = vadd.f32 0.0, %v610
  %v612 = vpop.f32.mrf.mxu0
  %v613 = vpop.f32.mrf.mxu0
  %v614 = vadd.f32 0.0, %v613
  %v615 = vpop.f32.mrf.mxu0
  %616 = vdwg.mxu0
  %v617 = vpack.c.bf16 %v558, %v555
  %v618 = vpack.c.bf16 %v566, %v563
  %v619 = vpack.c.bf16 %v574, %v571
  %v620 = vpack.c.bf16 %v582, %v579
  %v621 = vpack.c.bf16 %v590, %v587
  %v622 = vpack.c.bf16 %v598, %v595
  %v623 = vpack.c.bf16 %v606, %v603
  %v624 = vpack.c.bf16 %v614, %v611
  %v626 = vlaneseq
  %v627 = vshrl.u32 %v626, 7
  %v628 = vsub.s32 0, %v627
  %v629 = vrot.slane %v471, %v628
  %631 = vmatprep.subr.bf16.mxu0 0
  %632 = vmatpush1.bf16.msra.mxu0 %v624
  %633 = vmatprep.subr.bf16.mxu0 0
  %634 = vmatpush1.bf16.msra.mxu0 %v623
  %635 = vmatprep.subr.bf16.mxu0 0
  %636 = vmatpush1.bf16.msra.mxu0 %v622
  %637 = vmatprep.subr.bf16.mxu0 0
  %638 = vmatpush1.bf16.msra.mxu0 %v621
  %639 = vmatprep.subr.bf16.mxu0 0
  %640 = vmatpush1.bf16.msra.mxu0 %v620
  %641 = vmatprep.subr.bf16.mxu0 0
  %642 = vmatpush1.bf16.msra.mxu0 %v619
  %643 = vmatprep.subr.bf16.mxu0 0
  %644 = vmatpush1.bf16.msra.mxu0 %v618
  %645 = vmatprep.subr.bf16.mxu0 0
  %646 = vmatpush1.bf16.msra.mxu0 %v617
  %647 = vmatprep.subr.bf16.mxu0 0
  %648 = vmatpush2.bf16.msra.mxu0 0
  %649 = vmatprep.subr.bf16.mxu0 0
  %650 = vmatpush2.bf16.msra.mxu0 0
  %651 = vmatprep.subr.bf16.mxu0 0
  %652 = vmatpush2.bf16.msra.mxu0 0
  %653 = vmatprep.subr.bf16.mxu0 0
  %654 = vmatpush2.bf16.msra.mxu0 0
  %655 = vmatprep.subr.bf16.mxu0 0
  %656 = vmatpush2.bf16.msra.mxu0 0
  %657 = vmatprep.subr.bf16.mxu0 0
  %658 = vmatpush2.bf16.msra.mxu0 0
  %659 = vmatprep.subr.bf16.mxu0 0
  %660 = vmatpush2.bf16.msra.mxu0 0
  %661 = vmatprep.subr.bf16.mxu0 0
  %662 = vmatpush2.bf16.msra.mxu0 0
  %663 = vmatprep.mubr.bf16.mxu0 0
  %664 = vmatmul.mubr.bf16.gmra.mxu0 %v318
  %v665 = vpop.f32.mrf.mxu0
  %v666 = vadd.f32 %v629, %v665
  %v667 = vpop.f32.mrf.mxu0
  %v668 = vpop.f32.mrf.mxu0
  %v669 = vadd.f32 %v629, %v668
  %v670 = vpop.f32.mrf.mxu0
  %671 = vmatprep.mubr.bf16.mxu0 0
  %672 = vmatmul.mubr.bf16.gmra.mxu0 %v319
  %v673 = vpop.f32.mrf.mxu0
  %v674 = vadd.f32 %v629, %v673
  %v675 = vpop.f32.mrf.mxu0
  %v676 = vpop.f32.mrf.mxu0
  %v677 = vadd.f32 %v629, %v676
  %v678 = vpop.f32.mrf.mxu0
  %679 = vmatprep.mubr.bf16.mxu0 0
  %680 = vmatmul.mubr.bf16.gmra.mxu0 %v320
  %v681 = vpop.f32.mrf.mxu0
  %v682 = vadd.f32 %v629, %v681
  %v683 = vpop.f32.mrf.mxu0
  %v684 = vpop.f32.mrf.mxu0
  %v685 = vadd.f32 %v629, %v684
  %v686 = vpop.f32.mrf.mxu0
  %687 = vmatprep.mubr.bf16.mxu0 0
  %688 = vmatmul.mubr.bf16.gmra.mxu0 %v321
  %v689 = vpop.f32.mrf.mxu0
  %v690 = vadd.f32 %v629, %v689
  %v691 = vpop.f32.mrf.mxu0
  %v692 = vpop.f32.mrf.mxu0
  %v693 = vadd.f32 %v629, %v692
  %v694 = vpop.f32.mrf.mxu0
  %695 = vmatprep.mubr.bf16.mxu0 0
  %696 = vmatmul.mubr.bf16.gmra.mxu0 %v322
  %v697 = vpop.f32.mrf.mxu0
  %v698 = vadd.f32 %v629, %v697
  %v699 = vpop.f32.mrf.mxu0
  %v700 = vpop.f32.mrf.mxu0
  %v701 = vadd.f32 %v629, %v700
  %v702 = vpop.f32.mrf.mxu0
  %703 = vmatprep.mubr.bf16.mxu0 0
  %704 = vmatmul.mubr.bf16.gmra.mxu0 %v323
  %v705 = vpop.f32.mrf.mxu0
  %v706 = vadd.f32 %v629, %v705
  %v707 = vpop.f32.mrf.mxu0
  %v708 = vpop.f32.mrf.mxu0
  %v709 = vadd.f32 %v629, %v708
  %v710 = vpop.f32.mrf.mxu0
  %711 = vmatprep.mubr.bf16.mxu0 0
  %712 = vmatmul.mubr.bf16.gmra.mxu0 %v324
  %v713 = vpop.f32.mrf.mxu0
  %v714 = vadd.f32 %v629, %v713
  %v715 = vpop.f32.mrf.mxu0
  %v716 = vpop.f32.mrf.mxu0
  %v717 = vadd.f32 %v629, %v716
  %v718 = vpop.f32.mrf.mxu0
  %719 = vmatprep.mubr.bf16.mxu0 0
  %720 = vmatmul.mubr.bf16.gmra.mxu0 %v325
  %v721 = vpop.f32.mrf.mxu0
  %v722 = vadd.f32 %v629, %v721
  %v723 = vpop.f32.mrf.mxu0
  %v724 = vpop.f32.mrf.mxu0
  %v725 = vadd.f32 %v629, %v724
  %v726 = vpop.f32.mrf.mxu0
  %727 = vdwg.mxu0
  %v728 = vmax.f32 %v666, 0.0
  %v729 = vmax.f32 %v669, 0.0
  %v730 = vmax.f32 %v674, 0.0
  %v731 = vmax.f32 %v677, 0.0
  %v732 = vmax.f32 %v682, 0.0
  %v733 = vmax.f32 %v685, 0.0
  %v734 = vmax.f32 %v690, 0.0
  %v735 = vmax.f32 %v693, 0.0
  %v736 = vmax.f32 %v698, 0.0
  %v737 = vmax.f32 %v701, 0.0
  %v738 = vmax.f32 %v706, 0.0
  %v739 = vmax.f32 %v709, 0.0
  %v740 = vmax.f32 %v714, 0.0
  %v741 = vmax.f32 %v717, 0.0
  %v742 = vmax.f32 %v722, 0.0
  %v743 = vmax.f32 %v725, 0.0
  %v744 = vpack.c.bf16 %v729, %v728
  %v745 = vpack.c.bf16 %v731, %v730
  %v746 = vpack.c.bf16 %v733, %v732
  %v747 = vpack.c.bf16 %v735, %v734
  %v748 = vpack.c.bf16 %v737, %v736
  %v749 = vpack.c.bf16 %v739, %v738
  %v750 = vpack.c.bf16 %v741, %v740
  %v751 = vpack.c.bf16 %v743, %v742
  %v752 = vld [vmem:[%s6] sm:$0xf]
  %v753 = vld [vmem:[%s6 + $0x4] sm:$0xf]
  %v754 = vld [vmem:[%s6 + $0x8] sm:$0xf]
  %v755 = vld [vmem:[%s6 + $0xc] sm:$0xf]
  %v756 = vld [vmem:[%s6 + $0x10] sm:$0xf]
  %v757 = vld [vmem:[%s6 + $0x14] sm:$0xf]
  %v758 = vld [vmem:[%s6 + $0x18] sm:$0xf]
  %v759 = vld [vmem:[%s6 + $0x1c] sm:$0xf]
  %v760 = vld [vmem:[%s6 + $0x20] sm:$0xf]
  %v761 = vld [vmem:[%s6 + $0x24] sm:$0xf]
  %v762 = vld [vmem:[%s6 + $0x28] sm:$0xf]
  %v763 = vld [vmem:[%s6 + $0x2c] sm:$0xf]
  %v764 = vld [vmem:[%s6 + $0x30] sm:$0xf]
  %v765 = vld [vmem:[%s6 + $0x34] sm:$0xf]
  %v766 = vld [vmem:[%s6 + $0x38] sm:$0xf]
  %v767 = vld [vmem:[%s6 + $0x3c] sm:$0xf]
  %v768 = vld [vmem:[%s7] sm:$0x1]
  %v785 = vunpack.c.l.b16 %v752
  %v786 = vunpack.c.l.b16 %v753
  %v787 = vunpack.c.l.b16 %v754
  %v788 = vunpack.c.l.b16 %v755
  %v789 = vunpack.c.l.b16 %v756
  %v790 = vunpack.c.l.b16 %v757
  %v791 = vunpack.c.l.b16 %v758
  %v792 = vunpack.c.l.b16 %v759
  %v793 = vunpack.c.l.b16 %v760
  %v794 = vunpack.c.l.b16 %v761
  %v795 = vunpack.c.l.b16 %v762
  %v796 = vunpack.c.l.b16 %v763
  %v797 = vunpack.c.l.b16 %v764
  %v798 = vunpack.c.l.b16 %v765
  %v799 = vunpack.c.l.b16 %v766
  %v800 = vunpack.c.l.b16 %v767
  %v801 = vpack.c.b16 %v786, %v785
  %v802 = vpack.c.b16 %v788, %v787
  %v803 = vpack.c.b16 %v790, %v789
  %v804 = vpack.c.b16 %v792, %v791
  %v805 = vpack.c.b16 %v794, %v793
  %v806 = vpack.c.b16 %v796, %v795
  %v807 = vpack.c.b16 %v798, %v797
  %v808 = vpack.c.b16 %v800, %v799
  %817 = vmatprep.subr.bf16.mxu0 0
  %818 = vmatpush1.bf16.msra.mxu0 %v808
  %819 = vmatprep.subr.bf16.mxu0 0
  %820 = vmatpush1.bf16.msra.mxu0 %v807
  %821 = vmatprep.subr.bf16.mxu0 0
  %822 = vmatpush1.bf16.msra.mxu0 %v806
  %823 = vmatprep.subr.bf16.mxu0 0
  %824 = vmatpush1.bf16.msra.mxu0 %v805
  %825 = vmatprep.subr.bf16.mxu0 0
  %826 = vmatpush1.bf16.msra.mxu0 %v804
  %827 = vmatprep.subr.bf16.mxu0 0
  %828 = vmatpush1.bf16.msra.mxu0 %v803
  %829 = vmatprep.subr.bf16.mxu0 0
  %830 = vmatpush1.bf16.msra.mxu0 %v802
  %831 = vmatprep.subr.bf16.mxu0 0
  %832 = vmatpush1.bf16.msra.mxu0 %v801
  %833 = vmatprep.subr.bf16.mxu0 0
  %834 = vmatpush2.bf16.msra.mxu0 0
  %835 = vmatprep.subr.bf16.mxu0 0
  %836 = vmatpush2.bf16.msra.mxu0 0
  %837 = vmatprep.subr.bf16.mxu0 0
  %838 = vmatpush2.bf16.msra.mxu0 0
  %839 = vmatprep.subr.bf16.mxu0 0
  %840 = vmatpush2.bf16.msra.mxu0 0
  %841 = vmatprep.subr.bf16.mxu0 0
  %842 = vmatpush2.bf16.msra.mxu0 0
  %843 = vmatprep.subr.bf16.mxu0 0
  %844 = vmatpush2.bf16.msra.mxu0 0
  %845 = vmatprep.subr.bf16.mxu0 0
  %846 = vmatpush2.bf16.msra.mxu0 0
  %847 = vmatprep.subr.bf16.mxu0 0
  %848 = vmatpush2.bf16.msra.mxu0 0
  %849 = vmatprep.mubr.bf16.mxu0 0
  %850 = vmatmul.mubr.bf16.gmra.mxu0 %v744
  %v851 = vpop.f32.mrf.mxu0
  %v852 = vadd.f32 0.0, %v851
  %v853 = vpop.f32.mrf.mxu0
  %v854 = vpop.f32.mrf.mxu0
  %v855 = vadd.f32 0.0, %v854
  %v856 = vpop.f32.mrf.mxu0
  %857 = vmatprep.mubr.bf16.mxu0 0
  %858 = vmatmul.mubr.bf16.gmra.mxu0 %v745
  %v859 = vpop.f32.mrf.mxu0
  %v860 = vadd.f32 0.0, %v859
  %v861 = vpop.f32.mrf.mxu0
  %v862 = vpop.f32.mrf.mxu0
  %v863 = vadd.f32 0.0, %v862
  %v864 = vpop.f32.mrf.mxu0
  %865 = vmatprep.mubr.bf16.mxu0 0
  %866 = vmatmul.mubr.bf16.gmra.mxu0 %v746
  %v867 = vpop.f32.mrf.mxu0
  %v868 = vadd.f32 0.0, %v867
  %v869 = vpop.f32.mrf.mxu0
  %v870 = vpop.f32.mrf.mxu0
  %v871 = vadd.f32 0.0, %v870
  %v872 = vpop.f32.mrf.mxu0
  %873 = vmatprep.mubr.bf16.mxu0 0
  %874 = vmatmul.mubr.bf16.gmra.mxu0 %v747
  %v875 = vpop.f32.mrf.mxu0
  %v876 = vadd.f32 0.0, %v875
  %v877 = vpop.f32.mrf.mxu0
  %v878 = vpop.f32.mrf.mxu0
  %v879 = vadd.f32 0.0, %v878
  %v880 = vpop.f32.mrf.mxu0
  %881 = vmatprep.mubr.bf16.mxu0 0
  %882 = vmatmul.mubr.bf16.gmra.mxu0 %v748
  %v883 = vpop.f32.mrf.mxu0
  %v884 = vadd.f32 0.0, %v883
  %v885 = vpop.f32.mrf.mxu0
  %v886 = vpop.f32.mrf.mxu0
  %v887 = vadd.f32 0.0, %v886
  %v888 = vpop.f32.mrf.mxu0
  %889 = vmatprep.mubr.bf16.mxu0 0
  %890 = vmatmul.mubr.bf16.gmra.mxu0 %v749
  %v891 = vpop.f32.mrf.mxu0
  %v892 = vadd.f32 0.0, %v891
  %v893 = vpop.f32.mrf.mxu0
  %v894 = vpop.f32.mrf.mxu0
  %v895 = vadd.f32 0.0, %v894
  %v896 = vpop.f32.mrf.mxu0
  %897 = vmatprep.mubr.bf16.mxu0 0
  %898 = vmatmul.mubr.bf16.gmra.mxu0 %v750
  %v899 = vpop.f32.mrf.mxu0
  %v900 = vadd.f32 0.0, %v899
  %v901 = vpop.f32.mrf.mxu0
  %v902 = vpop.f32.mrf.mxu0
  %v903 = vadd.f32 0.0, %v902
  %v904 = vpop.f32.mrf.mxu0
  %905 = vmatprep.mubr.bf16.mxu0 0
  %906 = vmatmul.mubr.bf16.gmra.mxu0 %v751
  %v907 = vpop.f32.mrf.mxu0
  %v908 = vadd.f32 0.0, %v907
  %v909 = vpop.f32.mrf.mxu0
  %v910 = vpop.f32.mrf.mxu0
  %v911 = vadd.f32 0.0, %v910
  %v912 = vpop.f32.mrf.mxu0
  %913 = vdwg.mxu0
  %v914 = vpack.c.bf16 %v855, %v852
  %v915 = vpack.c.bf16 %v863, %v860
  %v916 = vpack.c.bf16 %v871, %v868
  %v917 = vpack.c.bf16 %v879, %v876
  %v918 = vpack.c.bf16 %v887, %v884
  %v919 = vpack.c.bf16 %v895, %v892
  %v920 = vpack.c.bf16 %v903, %v900
  %v921 = vpack.c.bf16 %v911, %v908
  %v923 = vlaneseq
  %v924 = vshrl.u32 %v923, 7
  %v925 = vsub.s32 0, %v924
  %v926 = vrot.slane %v768, %v925
  %928 = vmatprep.subr.bf16.mxu0 0
  %929 = vmatpush1.bf16.msra.mxu0 %v921
  %930 = vmatprep.subr.bf16.mxu0 0
  %931 = vmatpush1.bf16.msra.mxu0 %v920
  %932 = vmatprep.subr.bf16.mxu0 0
  %933 = vmatpush1.bf16.msra.mxu0 %v919
  %934 = vmatprep.subr.bf16.mxu0 0
  %935 = vmatpush1.bf16.msra.mxu0 %v918
  %936 = vmatprep.subr.bf16.mxu0 0
  %937 = vmatpush1.bf16.msra.mxu0 %v917
  %938 = vmatprep.subr.bf16.mxu0 0
  %939 = vmatpush1.bf16.msra.mxu0 %v916
  %940 = vmatprep.subr.bf16.mxu0 0
  %941 = vmatpush1.bf16.msra.mxu0 %v915
  %942 = vmatprep.subr.bf16.mxu0 0
  %943 = vmatpush1.bf16.msra.mxu0 %v914
  %944 = vmatprep.subr.bf16.mxu0 0
  %945 = vmatpush2.bf16.msra.mxu0 0
  %946 = vmatprep.subr.bf16.mxu0 0
  %947 = vmatpush2.bf16.msra.mxu0 0
  %948 = vmatprep.subr.bf16.mxu0 0
  %949 = vmatpush2.bf16.msra.mxu0 0
  %950 = vmatprep.subr.bf16.mxu0 0
  %951 = vmatpush2.bf16.msra.mxu0 0
  %952 = vmatprep.subr.bf16.mxu0 0
  %953 = vmatpush2.bf16.msra.mxu0 0
  %954 = vmatprep.subr.bf16.mxu0 0
  %955 = vmatpush2.bf16.msra.mxu0 0
  %956 = vmatprep.subr.bf16.mxu0 0
  %957 = vmatpush2.bf16.msra.mxu0 0
  %958 = vmatprep.subr.bf16.mxu0 0
  %959 = vmatpush2.bf16.msra.mxu0 0
  %960 = vmatprep.mubr.bf16.mxu0 0
  %961 = vmatmul.mubr.bf16.gmra.mxu0 %v318
  %v962 = vpop.f32.mrf.mxu0
  %v963 = vadd.f32 %v926, %v962
  %v964 = vpop.f32.mrf.mxu0
  %v965 = vpop.f32.mrf.mxu0
  %v966 = vadd.f32 %v926, %v965
  %v967 = vpop.f32.mrf.mxu0
  %968 = vmatprep.mubr.bf16.mxu0 0
  %969 = vmatmul.mubr.bf16.gmra.mxu0 %v319
  %v970 = vpop.f32.mrf.mxu0
  %v971 = vadd.f32 %v926, %v970
  %v972 = vpop.f32.mrf.mxu0
  %v973 = vpop.f32.mrf.mxu0
  %v974 = vadd.f32 %v926, %v973
  %v975 = vpop.f32.mrf.mxu0
  %976 = vmatprep.mubr.bf16.mxu0 0
  %977 = vmatmul.mubr.bf16.gmra.mxu0 %v320
  %v978 = vpop.f32.mrf.mxu0
  %v979 = vadd.f32 %v926, %v978
  %v980 = vpop.f32.mrf.mxu0
  %v981 = vpop.f32.mrf.mxu0
  %v982 = vadd.f32 %v926, %v981
  %v983 = vpop.f32.mrf.mxu0
  %984 = vmatprep.mubr.bf16.mxu0 0
  %985 = vmatmul.mubr.bf16.gmra.mxu0 %v321
  %v986 = vpop.f32.mrf.mxu0
  %v987 = vadd.f32 %v926, %v986
  %v988 = vpop.f32.mrf.mxu0
  %v989 = vpop.f32.mrf.mxu0
  %v990 = vadd.f32 %v926, %v989
  %v991 = vpop.f32.mrf.mxu0
  %992 = vmatprep.mubr.bf16.mxu0 0
  %993 = vmatmul.mubr.bf16.gmra.mxu0 %v322
  %v994 = vpop.f32.mrf.mxu0
  %v995 = vadd.f32 %v926, %v994
  %v996 = vpop.f32.mrf.mxu0
  %v997 = vpop.f32.mrf.mxu0
  %v998 = vadd.f32 %v926, %v997
  %v999 = vpop.f32.mrf.mxu0
  %1000 = vmatprep.mubr.bf16.mxu0 0
  %1001 = vmatmul.mubr.bf16.gmra.mxu0 %v323
  %v1002 = vpop.f32.mrf.mxu0
  %v1003 = vadd.f32 %v926, %v1002
  %v1004 = vpop.f32.mrf.mxu0
  %v1005 = vpop.f32.mrf.mxu0
  %v1006 = vadd.f32 %v926, %v1005
  %v1007 = vpop.f32.mrf.mxu0
  %1008 = vmatprep.mubr.bf16.mxu0 0
  %1009 = vmatmul.mubr.bf16.gmra.mxu0 %v324
  %v1010 = vpop.f32.mrf.mxu0
  %v1011 = vadd.f32 %v926, %v1010
  %v1012 = vpop.f32.mrf.mxu0
  %v1013 = vpop.f32.mrf.mxu0
  %v1014 = vadd.f32 %v926, %v1013
  %v1015 = vpop.f32.mrf.mxu0
  %1016 = vmatprep.mubr.bf16.mxu0 0
  %1017 = vmatmul.mubr.bf16.gmra.mxu0 %v325
  %v1018 = vpop.f32.mrf.mxu0
  %v1019 = vadd.f32 %v926, %v1018
  %v1020 = vpop.f32.mrf.mxu0
  %v1021 = vpop.f32.mrf.mxu0
  %v1022 = vadd.f32 %v926, %v1021
  %v1023 = vpop.f32.mrf.mxu0
  %1024 = vdwg.mxu0
  %v1025 = vlaneseq
  %v1026 = vand.u32 %v1025, 127
  %vm1027 = vcmp.lt.s32.totalorder %v1026, 10
  %v1028 = vsel %vm1027, %v963, -1e+30
  %v1029 = vsel %vm1027, %v966, -1e+30
  %v1030 = vsel %vm1027, %v971, -1e+30
  %v1031 = vsel %vm1027, %v974, -1e+30
  %v1032 = vsel %vm1027, %v979, -1e+30
  %v1033 = vsel %vm1027, %v982, -1e+30
  %v1034 = vsel %vm1027, %v987, -1e+30
  %v1035 = vsel %vm1027, %v990, -1e+30
  %v1036 = vsel %vm1027, %v995, -1e+30
  %v1037 = vsel %vm1027, %v998, -1e+30
  %v1038 = vsel %vm1027, %v1003, -1e+30
  %v1039 = vsel %vm1027, %v1006, -1e+30
  %v1040 = vsel %vm1027, %v1011, -1e+30
  %v1041 = vsel %vm1027, %v1014, -1e+30
  %v1042 = vsel %vm1027, %v1019, -1e+30
  %v1043 = vsel %vm1027, %v1022, -1e+30
  %1044 = vmax.xlane.f32.xlu0 %v1028
  %v1045 = vpop.xlane.xlu0 %1044
  %1046 = vmax.xlane.f32.xlu0 %v1029
  %v1047 = vpop.xlane.xlu0 %1046
  %1048 = vmax.xlane.f32.xlu0 %v1030
  %v1049 = vpop.xlane.xlu0 %1048
  %1050 = vmax.xlane.f32.xlu0 %v1031
  %v1051 = vpop.xlane.xlu0 %1050
  %1052 = vmax.xlane.f32.xlu0 %v1032
  %v1053 = vpop.xlane.xlu0 %1052
  %1054 = vmax.xlane.f32.xlu0 %v1033
  %v1055 = vpop.xlane.xlu0 %1054
  %1056 = vmax.xlane.f32.xlu0 %v1034
  %v1057 = vpop.xlane.xlu0 %1056
  %1058 = vmax.xlane.f32.xlu0 %v1035
  %v1059 = vpop.xlane.xlu0 %1058
  %1060 = vmax.xlane.f32.xlu0 %v1036
  %v1061 = vpop.xlane.xlu0 %1060
  %1062 = vmax.xlane.f32.xlu0 %v1037
  %v1063 = vpop.xlane.xlu0 %1062
  %1064 = vmax.xlane.f32.xlu0 %v1038
  %v1065 = vpop.xlane.xlu0 %1064
  %1066 = vmax.xlane.f32.xlu0 %v1039
  %v1067 = vpop.xlane.xlu0 %1066
  %1068 = vmax.xlane.f32.xlu0 %v1040
  %v1069 = vpop.xlane.xlu0 %1068
  %1070 = vmax.xlane.f32.xlu0 %v1041
  %v1071 = vpop.xlane.xlu0 %1070
  %1072 = vmax.xlane.f32.xlu0 %v1042
  %v1073 = vpop.xlane.xlu0 %1072
  %1074 = vmax.xlane.f32.xlu0 %v1043
  %v1075 = vpop.xlane.xlu0 %1074
  %v1076 = vsub.f32 %v1028, %v1045
  %v1077 = vsub.f32 %v1029, %v1047
  %v1078 = vsub.f32 %v1030, %v1049
  %v1079 = vsub.f32 %v1031, %v1051
  %v1080 = vsub.f32 %v1032, %v1053
  %v1081 = vsub.f32 %v1033, %v1055
  %v1082 = vsub.f32 %v1034, %v1057
  %v1083 = vsub.f32 %v1035, %v1059
  %v1084 = vsub.f32 %v1036, %v1061
  %v1085 = vsub.f32 %v1037, %v1063
  %v1086 = vsub.f32 %v1038, %v1065
  %v1087 = vsub.f32 %v1039, %v1067
  %v1088 = vsub.f32 %v1040, %v1069
  %v1089 = vsub.f32 %v1041, %v1071
  %v1090 = vsub.f32 %v1042, %v1073
  %v1091 = vsub.f32 %v1043, %v1075
  %v1092 = vmul.f32 %v1076, 1.442695
  %v1093 = vpow.pop %v1092
  %v1094 = vmul.f32 %v1077, 1.442695
  %v1095 = vpow.pop %v1094
  %v1096 = vmul.f32 %v1078, 1.442695
  %v1097 = vpow.pop %v1096
  %v1098 = vmul.f32 %v1079, 1.442695
  %v1099 = vpow.pop %v1098
  %v1100 = vmul.f32 %v1080, 1.442695
  %v1101 = vpow.pop %v1100
  %v1102 = vmul.f32 %v1081, 1.442695
  %v1103 = vpow.pop %v1102
  %v1104 = vmul.f32 %v1082, 1.442695
  %v1105 = vpow.pop %v1104
  %v1106 = vmul.f32 %v1083, 1.442695
  %v1107 = vpow.pop %v1106
  %v1108 = vmul.f32 %v1084, 1.442695
  %v1109 = vpow.pop %v1108
  %v1110 = vmul.f32 %v1085, 1.442695
  %v1111 = vpow.pop %v1110
  %v1112 = vmul.f32 %v1086, 1.442695
  %v1113 = vpow.pop %v1112
  %v1114 = vmul.f32 %v1087, 1.442695
  %v1115 = vpow.pop %v1114
  %v1116 = vmul.f32 %v1088, 1.442695
  %v1117 = vpow.pop %v1116
  %v1118 = vmul.f32 %v1089, 1.442695
  %v1119 = vpow.pop %v1118
  %v1120 = vmul.f32 %v1090, 1.442695
  %v1121 = vpow.pop %v1120
  %v1122 = vmul.f32 %v1091, 1.442695
  %v1123 = vpow.pop %v1122
  %v1124 = vsel %vm1027, %v1093, 0.0
  %v1125 = vsel %vm1027, %v1095, 0.0
  %v1126 = vsel %vm1027, %v1097, 0.0
  %v1127 = vsel %vm1027, %v1099, 0.0
  %v1128 = vsel %vm1027, %v1101, 0.0
  %v1129 = vsel %vm1027, %v1103, 0.0
  %v1130 = vsel %vm1027, %v1105, 0.0
  %v1131 = vsel %vm1027, %v1107, 0.0
  %v1132 = vsel %vm1027, %v1109, 0.0
  %v1133 = vsel %vm1027, %v1111, 0.0
  %v1134 = vsel %vm1027, %v1113, 0.0
  %v1135 = vsel %vm1027, %v1115, 0.0
  %v1136 = vsel %vm1027, %v1117, 0.0
  %v1137 = vsel %vm1027, %v1119, 0.0
  %v1138 = vsel %vm1027, %v1121, 0.0
  %v1139 = vsel %vm1027, %v1123, 0.0
  %1140 = vadd.xlane.f32.xlu0 %v1124
  %v1141 = vpop.xlane.xlu0 %1140
  %1142 = vadd.xlane.f32.xlu0 %v1125
  %v1143 = vpop.xlane.xlu0 %1142
  %1144 = vadd.xlane.f32.xlu0 %v1126
  %v1145 = vpop.xlane.xlu0 %1144
  %1146 = vadd.xlane.f32.xlu0 %v1127
  %v1147 = vpop.xlane.xlu0 %1146
  %1148 = vadd.xlane.f32.xlu0 %v1128
  %v1149 = vpop.xlane.xlu0 %1148
  %1150 = vadd.xlane.f32.xlu0 %v1129
  %v1151 = vpop.xlane.xlu0 %1150
  %1152 = vadd.xlane.f32.xlu0 %v1130
  %v1153 = vpop.xlane.xlu0 %1152
  %1154 = vadd.xlane.f32.xlu0 %v1131
  %v1155 = vpop.xlane.xlu0 %1154
  %1156 = vadd.xlane.f32.xlu0 %v1132
  %v1157 = vpop.xlane.xlu0 %1156
  %1158 = vadd.xlane.f32.xlu0 %v1133
  %v1159 = vpop.xlane.xlu0 %1158
  %1160 = vadd.xlane.f32.xlu0 %v1134
  %v1161 = vpop.xlane.xlu0 %1160
  %1162 = vadd.xlane.f32.xlu0 %v1135
  %v1163 = vpop.xlane.xlu0 %1162
  %1164 = vadd.xlane.f32.xlu0 %v1136
  %v1165 = vpop.xlane.xlu0 %1164
  %1166 = vadd.xlane.f32.xlu0 %v1137
  %v1167 = vpop.xlane.xlu0 %1166
  %1168 = vadd.xlane.f32.xlu0 %v1138
  %v1169 = vpop.xlane.xlu0 %1168
  %1170 = vadd.xlane.f32.xlu0 %v1139
  %v1171 = vpop.xlane.xlu0 %1170
  %v1172 = vlog2.pop %v1141
  %v1173 = vmul.f32 %v1172, 0.6931472
  %v1174 = vlog2.pop %v1143
  %v1175 = vmul.f32 %v1174, 0.6931472
  %v1176 = vlog2.pop %v1145
  %v1177 = vmul.f32 %v1176, 0.6931472
  %v1178 = vlog2.pop %v1147
  %v1179 = vmul.f32 %v1178, 0.6931472
  %v1180 = vlog2.pop %v1149
  %v1181 = vmul.f32 %v1180, 0.6931472
  %v1182 = vlog2.pop %v1151
  %v1183 = vmul.f32 %v1182, 0.6931472
  %v1184 = vlog2.pop %v1153
  %v1185 = vmul.f32 %v1184, 0.6931472
  %v1186 = vlog2.pop %v1155
  %v1187 = vmul.f32 %v1186, 0.6931472
  %v1188 = vlog2.pop %v1157
  %v1189 = vmul.f32 %v1188, 0.6931472
  %v1190 = vlog2.pop %v1159
  %v1191 = vmul.f32 %v1190, 0.6931472
  %v1192 = vlog2.pop %v1161
  %v1193 = vmul.f32 %v1192, 0.6931472
  %v1194 = vlog2.pop %v1163
  %v1195 = vmul.f32 %v1194, 0.6931472
  %v1196 = vlog2.pop %v1165
  %v1197 = vmul.f32 %v1196, 0.6931472
  %v1198 = vlog2.pop %v1167
  %v1199 = vmul.f32 %v1198, 0.6931472
  %v1200 = vlog2.pop %v1169
  %v1201 = vmul.f32 %v1200, 0.6931472
  %v1202 = vlog2.pop %v1171
  %v1203 = vmul.f32 %v1202, 0.6931472
  %v1204 = vsub.f32 %v1076, %v1173
  %v1205 = vsub.f32 %v1077, %v1175
  %v1206 = vsub.f32 %v1078, %v1177
  %v1207 = vsub.f32 %v1079, %v1179
  %v1208 = vsub.f32 %v1080, %v1181
  %v1209 = vsub.f32 %v1081, %v1183
  %v1210 = vsub.f32 %v1082, %v1185
  %v1211 = vsub.f32 %v1083, %v1187
  %v1212 = vsub.f32 %v1084, %v1189
  %v1213 = vsub.f32 %v1085, %v1191
  %v1214 = vsub.f32 %v1086, %v1193
  %v1215 = vsub.f32 %v1087, %v1195
  %v1216 = vsub.f32 %v1088, %v1197
  %v1217 = vsub.f32 %v1089, %v1199
  %v1218 = vsub.f32 %v1090, %v1201
  %v1219 = vsub.f32 %v1091, %v1203
  %v1220 = vsel %vm1027, %v1204, 0.0
  %v1221 = vsel %vm1027, %v1205, 0.0
  %v1222 = vsel %vm1027, %v1206, 0.0
  %v1223 = vsel %vm1027, %v1207, 0.0
  %v1224 = vsel %vm1027, %v1208, 0.0
  %v1225 = vsel %vm1027, %v1209, 0.0
  %v1226 = vsel %vm1027, %v1210, 0.0
  %v1227 = vsel %vm1027, %v1211, 0.0
  %v1228 = vsel %vm1027, %v1212, 0.0
  %v1229 = vsel %vm1027, %v1213, 0.0
  %v1230 = vsel %vm1027, %v1214, 0.0
  %v1231 = vsel %vm1027, %v1215, 0.0
  %v1232 = vsel %vm1027, %v1216, 0.0
  %v1233 = vsel %vm1027, %v1217, 0.0
  %v1234 = vsel %vm1027, %v1218, 0.0
  %v1235 = vsel %vm1027, %v1219, 0.0
  %1236 = vst [vmem:[%s8] sm:$0xff] %v1220
  %1237 = vst [vmem:[%s8 + $0x8] sm:$0xff] %v1221
  %1238 = vst [vmem:[%s8 + $0x10] sm:$0xff] %v1222
  %1239 = vst [vmem:[%s8 + $0x18] sm:$0xff] %v1223
  %1240 = vst [vmem:[%s8 + $0x20] sm:$0xff] %v1224
  %1241 = vst [vmem:[%s8 + $0x28] sm:$0xff] %v1225
  %1242 = vst [vmem:[%s8 + $0x30] sm:$0xff] %v1226
  %1243 = vst [vmem:[%s8 + $0x38] sm:$0xff] %v1227
  %1244 = vst [vmem:[%s8 + $0x40] sm:$0xff] %v1228
  %1245 = vst [vmem:[%s8 + $0x48] sm:$0xff] %v1229
  %1246 = vst [vmem:[%s8 + $0x50] sm:$0xff] %v1230
  %1247 = vst [vmem:[%s8 + $0x58] sm:$0xff] %v1231
  %1248 = vst [vmem:[%s8 + $0x60] sm:$0xff] %v1232
  %1249 = vst [vmem:[%s8 + $0x68] sm:$0xff] %v1233
  %1250 = vst [vmem:[%s8 + $0x70] sm:$0xff] %v1234
  %1251 = vst [vmem:[%s8 + $0x78] sm:$0xff] %v1235
  // Predicated region
  $region34: #{multilayer_gcn_forward.1} parent=0 // pred_check
    _
  $region35: #{multilayer_gcn_forward.1} parent=0 // pred_check_branch
    %1253 = sbr.rel (0) target = $region37
  $region36: #{multilayer_gcn_forward.1} parent=0 // pred_region
    _
  $region37: #{multilayer_gcn_forward.1} parent=0 // pred_fallthru
    _
  // Predicated region
  $region38: #{multilayer_gcn_forward.1} parent=0 // pred_check
    _
  $region39: #{multilayer_gcn_forward.1} parent=0 // pred_check_branch
    %1255 = sbr.rel (0) target = $region41
  $region40: #{multilayer_gcn_forward.1} parent=0 // pred_region
    _
  $region41: #{multilayer_gcn_forward.1} parent=0 // pred_fallthru
    _

</llo_original>
